<compile_context>
chip_gen: v7x
topology: tpu7x:2x2x1
jax: 0.10.0
libtpu: 0.0.40
codegen_flags: <defaults>
</compile_context>

<pallas_src>
import jax
import jax.numpy as jnp
from jax.experimental import pallas as pl
from jax.experimental.pallas import tpu as pltpu


NEG_SLOPE = 0.05
_MAX_TILE_N = 4096                 # rows per grid step (multiple of 8)
_VMEM_LIMIT = 48 * 1024 * 1024     # covers lane-padded tiles; < v7x 64 MiB phys


def _leaky(x):
    return jnp.where(x >= 0, x, NEG_SLOPE * x)


def _run_layer(x, w1, b1, w2, b2):
    h = _leaky(jnp.dot(x, w1, preferred_element_type=jnp.float32) + b1)
    return _leaky(jnp.dot(h, w2, preferred_element_type=jnp.float32) + b2)


def _link_pair_kernel(x1_ref, x2_ref, w1_ref, b1_ref, w2_ref, b2_ref, o_ref):
    x = _leaky(x1_ref[...].astype(jnp.float32) + x2_ref[...].astype(jnp.float32))
    y = _run_layer(x, w1_ref[...], b1_ref[...], w2_ref[...], b2_ref[...])
    o_ref[...] = y.astype(o_ref.dtype)


def _link_triple_kernel(x1_ref, x2_ref, x0_ref, w1_ref, b1_ref, w2_ref, b2_ref,
                        mix_ref, o_ref):
    w1, b1 = w1_ref[...], b1_ref[...]
    w2, b2 = w2_ref[...], b2_ref[...]
    od = w2.shape[1]
    x1 = x1_ref[...].astype(jnp.float32)
    x2 = x2_ref[...].astype(jnp.float32)
    x0 = x0_ref[...].astype(jnp.float32)

    def contrib(a, b, m):
        # One combo at a time: only one (tile_n, hidden)/(tile_n, out) pair of
        # intermediates is live, keeping peak VMEM low so tiles can be large.
        o = _run_layer(_leaky(a + b), w1, b1, w2, b2)       # (tile_n, out_dim)
        return jnp.dot(o, m, preferred_element_type=jnp.float32)

    acc = contrib(x1, x0, mix_ref[0:od, :])
    acc = acc + contrib(x2, x0, mix_ref[od:2 * od, :])
    acc = acc + contrib(x1, x2, mix_ref[2 * od:3 * od, :])
    o_ref[...] = acc.astype(o_ref.dtype)


def _round_up(x, m):
    return ((x + m - 1) // m) * m


def _choose_tile(n):
    tile = _round_up(min(n, _MAX_TILE_N), 8)
    if n >= 16:
        # Keep at least two grid steps so a "parallel" row grid can shard
        # across both TensorCores on v7x (harmless on 1-TC v5e/v6e).
        tile = min(tile, _round_up((n + 1) // 2, 8))
    return tile


def init_link_layer_params(key, in_dim, hidden_dim=16, out_dim=2,
                           dtype=jnp.float32):
    """Deterministic nn.Linear-style init: U(-1/sqrt(fan_in), 1/sqrt(fan_in))."""
    k1, k2, k3, k4 = jax.random.split(key, 4)
    lim1 = 1.0 / jnp.sqrt(jnp.array(in_dim, dtype))
    lim2 = 1.0 / jnp.sqrt(jnp.array(hidden_dim, dtype))
    # Stored already transposed: (in_features, out_features).
    w1 = jax.random.uniform(k1, (in_dim, hidden_dim), dtype, -lim1, lim1)
    b1 = jax.random.uniform(k2, (1, hidden_dim), dtype, -lim1, lim1)
    w2 = jax.random.uniform(k3, (hidden_dim, out_dim), dtype, -lim2, lim2)
    b2 = jax.random.uniform(k4, (1, out_dim), dtype, -lim2, lim2)
    return {"w1": w1, "b1": b1, "w2": w2, "b2": b2}


@jax.jit
def link_layer_forward(params, x1, x2, x0=None):
    """Pallas-backed LinkLayer.forward (useBN=False, final_act='leaky')."""
    w1, b1, w2, b2 = params["w1"], params["b1"], params["w2"], params["b2"]
    n, in_dim = x1.shape
    hidden_dim = w1.shape[1]
    out_dim = w2.shape[1]

    tile_n = _choose_tile(n)
    grid = (pl.cdiv(n, tile_n),)

    x_spec = pl.BlockSpec((tile_n, in_dim), lambda i: (i, 0))
    # Weights/biases/mix: full blocks with constant index_map -> VMEM-resident
    # across the whole row grid.
    param_specs = [
        pl.BlockSpec((in_dim, hidden_dim), lambda i: (0, 0)),
        pl.BlockSpec((1, hidden_dim), lambda i: (0, 0)),
        pl.BlockSpec((hidden_dim, out_dim), lambda i: (0, 0)),
        pl.BlockSpec((1, out_dim), lambda i: (0, 0)),
    ]
    cparams = pltpu.CompilerParams(
        dimension_semantics=("parallel",),
        vmem_limit_bytes=_VMEM_LIMIT,
    )
    w_bytes = 4 * (in_dim * hidden_dim + hidden_dim
                   + hidden_dim * out_dim + out_dim)
    layer_flops = 2 * (in_dim * hidden_dim + hidden_dim * out_dim)

    if x0 is None:
        cost = pl.CostEstimate(
            flops=n * layer_flops,
            transcendentals=0,
            bytes_accessed=4 * n * (2 * in_dim + out_dim) + w_bytes)
        return pl.pallas_call(
            _link_pair_kernel,
            out_shape=jax.ShapeDtypeStruct((n, out_dim), x1.dtype),
            grid=grid,
            in_specs=[x_spec, x_spec] + param_specs,
            out_specs=pl.BlockSpec((tile_n, out_dim), lambda i: (i, 0)),
            compiler_params=cparams,
            cost_estimate=cost,
        )(x1, x2, w1, b1, w2, b2)

    # Constant mixing matrix: rows = [o1_0, o1_1, o2_0, o2_1, o3_0, o3_1],
    # columns = 4 output columns, already divided by 3.
    mix = jnp.asarray(
        [[1., 0., 0., 0.],   # o1[:, 0]
         [0., 1., 1., 1.],   # o1[:, 1]
         [0., 1., 0., 0.],   # o2[:, 0]
         [1., 0., 1., 1.],   # o2[:, 1]
         [0., 0., 1., 0.],   # o3[:, 0]
         [1., 1., 0., 1.]],  # o3[:, 1]
        dtype=jnp.float32) / 3.0

    cost = pl.CostEstimate(
        flops=n * (3 * layer_flops + 3 * 2 * out_dim * 4),
        transcendentals=0,
        bytes_accessed=4 * n * (3 * in_dim + 4) + w_bytes + 4 * 3 * out_dim * 4)
    return pl.pallas_call(
        _link_triple_kernel,
        out_shape=jax.ShapeDtypeStruct((n, 4), x1.dtype),
        grid=grid,
        in_specs=[x_spec, x_spec, x_spec] + param_specs
                 + [pl.BlockSpec((3 * out_dim, 4), lambda i: (0, 0))],
        out_specs=pl.BlockSpec((tile_n, 4), lambda i: (i, 0)),
        compiler_params=cparams,
        cost_estimate=cost,
    )(x1, x2, x0, w1, b1, w2, b2, mix)


def _reference_forward(params, x1, x2, x0=None):
    """Pure-JAX reference matching the PyTorch module exactly."""
    w1, b1, w2, b2 = params["w1"], params["b1"], params["w2"], params["b2"]

    def run_layer(x):
        return _leaky(_leaky(x @ w1 + b1) @ w2 + b2)

    if x0 is None:
        return run_layer(_leaky(x1 + x2))
    o1 = run_layer(_leaky(x1 + x0))
    o2 = run_layer(_leaky(x2 + x0))
    o3 = run_layer(_leaky(x1 + x2))
    return jnp.stack(
        [(o1[:, 0] + o2[:, 1] + o3[:, 1]) / 3,
         (o2[:, 0] + o1[:, 1] + o3[:, 1]) / 3,
         (o3[:, 0] + o1[:, 1] + o2[:, 1]) / 3,
         (o1[:, 1] + o2[:, 1] + o3[:, 1]) / 3], axis=1)


if __name__ == "__main__":
    key = jax.random.PRNGKey(0)
    kp, kx1, kx2, kx0 = jax.random.split(key, 4)

    IN_DIM, HIDDEN = 32, 16
    params = init_link_layer_params(kp, IN_DIM, hidden_dim=HIDDEN, out_dim=2)

    ok = True
    # N=8:   single full tile.
    # N=37:  two tiles, non-multiple-of-8 rows, clipped (partial) last block.
    # N=300: two tiles with the "parallel" row grid (v7x megacore path).
    for N in (8, 37, 300):
        x1 = jax.random.normal(kx1, (N, IN_DIM), jnp.float32)
        x2 = jax.random.normal(kx2, (N, IN_DIM), jnp.float32)
        x0 = jax.random.normal(kx0, (N, IN_DIM), jnp.float32)

        out_pair = jax.block_until_ready(link_layer_forward(params, x1, x2))
        ref_pair = _reference_forward(params, x1, x2)
        ok &= out_pair.shape == (N, 2)
        ok &= bool(jnp.allclose(out_pair, ref_pair, atol=1e-5, rtol=1e-5))

        out_tri = jax.block_until_ready(link_layer_forward(params, x1, x2, x0))
        ref_tri = _reference_forward(params, x1, x2, x0)
        ok &= out_tri.shape == (N, 4)
        ok &= bool(jnp.allclose(out_tri, ref_tri, atol=1e-5, rtol=1e-5))

    assert ok
    print("KERNEL_OK")
</pallas_src>

<mosaic_0001>
module attributes {stable_mosaic.version = 11 : i64} {
  func.func @_link_pair_kernel(%arg0: i32, %arg1: memref<8x32xf32, #tpu.memory_space<vmem>>, %arg2: memref<8x32xf32, #tpu.memory_space<vmem>>, %arg3: memref<32x16xf32, #tpu.memory_space<vmem>>, %arg4: memref<1x16xf32, #tpu.memory_space<vmem>>, %arg5: memref<16x2xf32, #tpu.memory_space<vmem>>, %arg6: memref<1x2xf32, #tpu.memory_space<vmem>>, %arg7: memref<8x2xf32, #tpu.memory_space<vmem>>) attributes {dimension_semantics = [#tpu.dimension_semantics<parallel>], iteration_bounds = array<i64: 1>, scalar_prefetch = 0 : i64, scratch_operands = 0 : i64, tpu.core_type = #tpu.core_type<tc>, window_params = [{transform_indices = @transform_0, window_bounds = array<i64: 8, 32>}, {transform_indices = @transform_1, window_bounds = array<i64: 8, 32>}, {pipeline_mode = #tpu.pipeline_mode<synchronous>, transform_indices = @transform_2, window_bounds = array<i64: 32, 16>}, {pipeline_mode = #tpu.pipeline_mode<synchronous>, transform_indices = @transform_3, window_bounds = array<i64: 1, 16>}, {pipeline_mode = #tpu.pipeline_mode<synchronous>, transform_indices = @transform_4, window_bounds = array<i64: 16, 2>}, {pipeline_mode = #tpu.pipeline_mode<synchronous>, transform_indices = @transform_5, window_bounds = array<i64: 1, 2>}, {transform_indices = @transform_6, window_bounds = array<i64: 8, 2>}]} {
    %c0 = arith.constant 0 : index
    %c0_0 = arith.constant 0 : index
    %0 = vector.load %arg1[%c0, %c0_0] : memref<8x32xf32, #tpu.memory_space<vmem>>, vector<8x32xf32>
    %c0_1 = arith.constant 0 : index
    %c0_2 = arith.constant 0 : index
    %1 = vector.load %arg2[%c0_1, %c0_2] : memref<8x32xf32, #tpu.memory_space<vmem>>, vector<8x32xf32>
    %2 = arith.addf %0, %1 : vector<8x32xf32>
    %cst = arith.constant 0.000000e+00 : f32
    %3 = vector.broadcast %cst : f32 to vector<8x32xf32>
    %4 = arith.cmpf oge, %2, %3 : vector<8x32xf32>
    %cst_3 = arith.constant 5.000000e-02 : f32
    %5 = vector.broadcast %cst_3 : f32 to vector<8x32xf32>
    %6 = arith.mulf %5, %2 : vector<8x32xf32>
    %7 = arith.select %4, %2, %6 : vector<8x32xi1>, vector<8x32xf32>
    %c0_4 = arith.constant 0 : index
    %c0_5 = arith.constant 0 : index
    %8 = vector.load %arg3[%c0_4, %c0_5] : memref<32x16xf32, #tpu.memory_space<vmem>>, vector<32x16xf32>
    %c0_6 = arith.constant 0 : index
    %c0_7 = arith.constant 0 : index
    %9 = vector.load %arg4[%c0_6, %c0_7] : memref<1x16xf32, #tpu.memory_space<vmem>>, vector<1x16xf32>
    %c0_8 = arith.constant 0 : index
    %c0_9 = arith.constant 0 : index
    %10 = vector.load %arg5[%c0_8, %c0_9] : memref<16x2xf32, #tpu.memory_space<vmem>>, vector<16x2xf32>
    %c0_10 = arith.constant 0 : index
    %c0_11 = arith.constant 0 : index
    %11 = vector.load %arg6[%c0_10, %c0_11] : memref<1x2xf32, #tpu.memory_space<vmem>>, vector<1x2xf32>
    %cst_12 = arith.constant dense<0.000000e+00> : vector<8x16xf32>
    %12 = tpu.matmul %7, %8, %cst_12 {dimension_numbers = #tpu.dot_dimension_numbers<[1], [0], [0], [1], [0, 0, 1, 1], [], []>} : vector<8x32xf32>, vector<32x16xf32>, vector<8x16xf32> -> vector<8x16xf32>
    %13 = vector.broadcast %9 : vector<1x16xf32> to vector<8x16xf32>
    %14 = arith.addf %12, %13 : vector<8x16xf32>
    %cst_13 = arith.constant 0.000000e+00 : f32
    %15 = vector.broadcast %cst_13 : f32 to vector<8x16xf32>
    %16 = arith.cmpf oge, %14, %15 : vector<8x16xf32>
    %cst_14 = arith.constant 5.000000e-02 : f32
    %17 = vector.broadcast %cst_14 : f32 to vector<8x16xf32>
    %18 = arith.mulf %17, %14 : vector<8x16xf32>
    %19 = arith.select %16, %14, %18 : vector<8x16xi1>, vector<8x16xf32>
    %cst_15 = arith.constant dense<0.000000e+00> : vector<8x2xf32>
    %20 = tpu.matmul %19, %10, %cst_15 {dimension_numbers = #tpu.dot_dimension_numbers<[1], [0], [0], [1], [0, 0, 1, 1], [], []>} : vector<8x16xf32>, vector<16x2xf32>, vector<8x2xf32> -> vector<8x2xf32>
    %21 = vector.broadcast %11 : vector<1x2xf32> to vector<8x2xf32>
    %22 = arith.addf %20, %21 : vector<8x2xf32>
    %cst_16 = arith.constant 0.000000e+00 : f32
    %23 = vector.broadcast %cst_16 : f32 to vector<8x2xf32>
    %24 = arith.cmpf oge, %22, %23 : vector<8x2xf32>
    %cst_17 = arith.constant 5.000000e-02 : f32
    %25 = vector.broadcast %cst_17 : f32 to vector<8x2xf32>
    %26 = arith.mulf %25, %22 : vector<8x2xf32>
    %27 = arith.select %24, %22, %26 : vector<8x2xi1>, vector<8x2xf32>
    %c0_18 = arith.constant 0 : index
    %c0_19 = arith.constant 0 : index
    %28 = vector.load %arg7[%c0_18, %c0_19] : memref<8x2xf32, #tpu.memory_space<vmem>>, vector<8x2xf32>
    tpu.vector_store %arg7[%c0_18, %c0_19], %27 {strides = array<i32>} : memref<8x2xf32, #tpu.memory_space<vmem>>, vector<8x2xf32>,
    return
  }
  func.func @transform_0(%arg0: i32) -> (i32, i32) {
    %c0_i32 = arith.constant 0 : i32
    %c0_i32_0 = arith.constant 0 : i32
    return %arg0, %c0_i32 : i32, i32
  }
  func.func @transform_1(%arg0: i32) -> (i32, i32) {
    %c0_i32 = arith.constant 0 : i32
    %c0_i32_0 = arith.constant 0 : i32
    return %arg0, %c0_i32 : i32, i32
  }
  func.func @transform_2(%arg0: i32) -> (i32, i32) {
    %c0_i32 = arith.constant 0 : i32
    %c0_i32_0 = arith.constant 0 : i32
    %c0_i32_1 = arith.constant 0 : i32
    return %c0_i32, %c0_i32_0 : i32, i32
  }
  func.func @transform_3(%arg0: i32) -> (i32, i32) {
    %c0_i32 = arith.constant 0 : i32
    %c0_i32_0 = arith.constant 0 : i32
    %c0_i32_1 = arith.constant 0 : i32
    return %c0_i32, %c0_i32_0 : i32, i32
  }
  func.func @transform_4(%arg0: i32) -> (i32, i32) {
    %c0_i32 = arith.constant 0 : i32
    %c0_i32_0 = arith.constant 0 : i32
    %c0_i32_1 = arith.constant 0 : i32
    return %c0_i32, %c0_i32_0 : i32, i32
  }
  func.func @transform_5(%arg0: i32) -> (i32, i32) {
    %c0_i32 = arith.constant 0 : i32
    %c0_i32_0 = arith.constant 0 : i32
    %c0_i32_1 = arith.constant 0 : i32
    return %c0_i32, %c0_i32_0 : i32, i32
  }
  func.func @transform_6(%arg0: i32) -> (i32, i32) {
    %c0_i32 = arith.constant 0 : i32
    %c0_i32_0 = arith.constant 0 : i32
    return %arg0, %c0_i32 : i32, i32
  }
}

</mosaic_0001>

<llo_original>
// kernel: link_layer_forward.1
$region0: #{link_layer_forward.1}
  #allocation0 [shape = 'u32[]', space=smem, size = 0x4, offset = 0x4, fixed_abs, tag = 'smem constant byte address 0x4 - core index']
  #allocation1 [shape = 'u32[144,128]{1,0:T(1,128)}', space=vmem, size = 0x12000, scoped, tag = 'internal scratch']
  %s0 = inlined_call_operand.vmem [shape: f32[8,32], index: 0, kind: input, shape index: {}]
  %s1 = inlined_call_operand.vmem [shape: f32[8,32], index: 1, kind: input, shape index: {}]
  %s2 = inlined_call_operand.vmem [shape: f32[32,16], index: 2, kind: input, shape index: {}]
  %s3 = inlined_call_operand.vmem [shape: f32[1,16], index: 3, kind: input, shape index: {}]
  %s4 = inlined_call_operand.vmem [shape: f32[16,2], index: 4, kind: input, shape index: {}]
  %s5 = inlined_call_operand.vmem [shape: f32[1,2], index: 5, kind: input, shape index: {}]
  %s6 = inlined_call_operand.vmem [shape: f32[8,2], index: 6, kind: output, shape index: {}]
  %s7 = sld [smem:[#allocation0]]
  $region34: #{link_layer_forward.1} parent=0
    _
  %s9 = ssub.s32 1, %s7
  %s10 = scalar_select 0, %s9, %s7
  // Predicated region
  $region2: #{link_layer_forward.1} parent=0 // pred_check
    _
  $region3: #{link_layer_forward.1} parent=0 // pred_check_branch
    %12 = sbr.rel (0) target = $region5
  $region4: #{link_layer_forward.1} parent=0 // pred_region
    _
  $region5: #{link_layer_forward.1} parent=0 // pred_fallthru
    _
  // Predicated region
  $region6: #{link_layer_forward.1} parent=0 // pred_check
    _
  $region7: #{link_layer_forward.1} parent=0 // pred_check_branch
    %14 = sbr.rel (0) target = $region9
  $region8: #{link_layer_forward.1} parent=0 // pred_region
    _
  $region9: #{link_layer_forward.1} parent=0 // pred_fallthru
    _
  // Predicated region
  $region10: #{link_layer_forward.1} parent=0 // pred_check
    _
  $region11: #{link_layer_forward.1} parent=0 // pred_check_branch
    %16 = sbr.rel (0) target = $region13
  $region12: #{link_layer_forward.1} parent=0 // pred_region
    _
  $region13: #{link_layer_forward.1} parent=0 // pred_fallthru
    _
  // Predicated region
  $region14: #{link_layer_forward.1} parent=0 // pred_check
    _
  $region15: #{link_layer_forward.1} parent=0 // pred_check_branch
    %18 = sbr.rel (0) target = $region17
  $region16: #{link_layer_forward.1} parent=0 // pred_region
    _
  $region17: #{link_layer_forward.1} parent=0 // pred_fallthru
    _
  // Predicated region
  $region18: #{link_layer_forward.1} parent=0 // pred_check
    _
  $region19: #{link_layer_forward.1} parent=0 // pred_check_branch
    %20 = sbr.rel (0) target = $region21
  $region20: #{link_layer_forward.1} parent=0 // pred_region
    _
  $region21: #{link_layer_forward.1} parent=0 // pred_fallthru
    _
  // Predicated region
  $region22: #{link_layer_forward.1} parent=0 // pred_check
    _
  $region23: #{link_layer_forward.1} parent=0 // pred_check_branch
    %22 = sbr.rel (0) target = $region25
  $region24: #{link_layer_forward.1} parent=0 // pred_region
    _
  $region25: #{link_layer_forward.1} parent=0 // pred_fallthru
    _
  %v23 = vld [vmem:[%s0] sm:$0xff]
  %v24 = vld [vmem:[%s1] sm:$0xff]
  %v25 = vadd.f32 %v23, %v24
  %vm26 = vcmp.ge.f32.partialorder %v25, 0.0
  %v27 = vmul.f32 %v25, 0.05
  %v28 = vsel %vm26, %v25, %v27
  %v29 = vld [vmem:[%s2] sm:$0xff]
  %v30 = vld [vmem:[%s2 + $0x8] sm:$0xff]
  %v31 = vld [vmem:[%s2 + $0x10] sm:$0xff]
  %v32 = vld [vmem:[%s2 + $0x18] sm:$0xff]
  %v33 = vld [vmem:[%s3] sm:$0x1]
  %v34 = vld [vmem:[%s4] sm:$0xff]
  %v35 = vld [vmem:[%s4 + $0x8] sm:$0xff]
  %v36 = vld [vmem:[%s5] sm:$0x1]
  %v38 = vlaneseq
  %v39 = vshrl.u32 %v38, 7
  %v40 = vsub.s32 0, %v39
  %v41 = vrot.slane %v33, %v40
  %vm43 = vcmask 261120
  %v45 = vsel %vm43, %v28, 0
  %47 = vmatprep.subr.mxu0 0.0
  %48 = vmatpush1.msra.mxu0 %v29
  %49 = vmatprep.subr.mxu0 0.0
  %50 = vmatpush1.msra.mxu0 %v30
  %51 = vmatprep.subr.mxu0 0.0
  %52 = vmatpush1.msra.mxu0 %v31
  %53 = vmatprep.subr.mxu0 0.0
  %54 = vmatpush1.msra.mxu0 %v32
  %55 = vmatprep.subr.mxu0 0.0
  %56 = vmatpush1.msra.mxu0 0.0
  %57 = vmatprep.subr.mxu0 0.0
  %58 = vmatpush1.msra.mxu0 0.0
  %59 = vmatprep.subr.mxu0 0.0
  %60 = vmatpush1.msra.mxu0 0.0
  %61 = vmatprep.subr.mxu0 0.0
  %62 = vmatpush1.msra.mxu0 0.0
  %63 = vmatprep.subr.mxu0 0.0
  %64 = vmatpush1.msra.mxu0 0.0
  %65 = vmatprep.subr.mxu0 0.0
  %66 = vmatpush1.msra.mxu0 0.0
  %67 = vmatprep.subr.mxu0 0.0
  %68 = vmatpush1.msra.mxu0 0.0
  %69 = vmatprep.subr.mxu0 0.0
  %70 = vmatpush1.msra.mxu0 0.0
  %71 = vmatprep.subr.mxu0 0.0
  %72 = vmatpush1.msra.mxu0 0.0
  %73 = vmatprep.subr.mxu0 0.0
  %74 = vmatpush1.msra.mxu0 0.0
  %75 = vmatprep.subr.mxu0 0.0
  %76 = vmatpush1.msra.mxu0 0.0
  %77 = vmatprep.subr.mxu0 0.0
  %78 = vmatpush1.msra.mxu0 0.0
  %79 = vmatprep.subr.mxu0 0.0
  %80 = vmatpush1.msra.mxu0 0.0
  %81 = vmatprep.subr.mxu0 0.0
  %82 = vmatpush1.msra.mxu0 0.0
  %83 = vmatprep.subr.mxu0 0.0
  %84 = vmatpush1.msra.mxu0 0.0
  %85 = vmatprep.subr.mxu0 0.0
  %86 = vmatpush1.msra.mxu0 0.0
  %87 = vmatprep.subr.mxu0 0.0
  %88 = vmatpush1.msra.mxu0 0.0
  %89 = vmatprep.subr.mxu0 0.0
  %90 = vmatpush1.msra.mxu0 0.0
  %91 = vmatprep.subr.mxu0 0.0
  %92 = vmatpush1.msra.mxu0 0.0
  %93 = vmatprep.subr.mxu0 0.0
  %94 = vmatpush1.msra.mxu0 0.0
  %95 = vmatprep.subr.mxu0 0.0
  %96 = vmatpush1.msra.mxu0 0.0
  %97 = vmatprep.subr.mxu0 0.0
  %98 = vmatpush1.msra.mxu0 0.0
  %99 = vmatprep.subr.mxu0 0.0
  %100 = vmatpush1.msra.mxu0 0.0
  %101 = vmatprep.subr.mxu0 0.0
  %102 = vmatpush1.msra.mxu0 0.0
  %103 = vmatprep.subr.mxu0 0.0
  %104 = vmatpush1.msra.mxu0 0.0
  %105 = vmatprep.subr.mxu0 0.0
  %106 = vmatpush1.msra.mxu0 0.0
  %107 = vmatprep.subr.mxu0 0.0
  %108 = vmatpush1.msra.mxu0 0.0
  %109 = vmatprep.subr.mxu0 0.0
  %110 = vmatpush1.msra.mxu0 0.0
  %111 = vmatprep.mubr.f32.mxu0 0.0
  %112 = vmatmul.mubr.f32.gmra.mrb[0].mxu0 %v45
  %v113 = vpop.f32.mrb[0].mxu0
  %v114 = vadd.f32 %v41, %v113
  %v115 = vpop.f32.mrb[0].mxu0
  %116 = vdwg.mxu0
  %vm117 = vcmp.ge.f32.partialorder %v114, 0.0
  %v118 = vmul.f32 %v114, 0.05
  %v119 = vsel %vm117, %v114, %v118
  %v121 = vlaneseq
  %v122 = vshrl.u32 %v121, 7
  %v123 = vsub.s32 0, %v122
  %v124 = vrot.slane %v36, %v123
  %vm126 = vcmask 130048
  %v128 = vsel %vm126, %v119, 0
  %130 = vmatprep.subr.mxu0 0.0
  %131 = vmatpush1.msra.mxu0 %v34
  %132 = vmatprep.subr.mxu0 0.0
  %133 = vmatpush1.msra.mxu0 %v35
  %134 = vmatprep.subr.mxu0 0.0
  %135 = vmatpush1.msra.mxu0 0.0
  %136 = vmatprep.subr.mxu0 0.0
  %137 = vmatpush1.msra.mxu0 0.0
  %138 = vmatprep.subr.mxu0 0.0
  %139 = vmatpush1.msra.mxu0 0.0
  %140 = vmatprep.subr.mxu0 0.0
  %141 = vmatpush1.msra.mxu0 0.0
  %142 = vmatprep.subr.mxu0 0.0
  %143 = vmatpush1.msra.mxu0 0.0
  %144 = vmatprep.subr.mxu0 0.0
  %145 = vmatpush1.msra.mxu0 0.0
  %146 = vmatprep.subr.mxu0 0.0
  %147 = vmatpush1.msra.mxu0 0.0
  %148 = vmatprep.subr.mxu0 0.0
  %149 = vmatpush1.msra.mxu0 0.0
  %150 = vmatprep.subr.mxu0 0.0
  %151 = vmatpush1.msra.mxu0 0.0
  %152 = vmatprep.subr.mxu0 0.0
  %153 = vmatpush1.msra.mxu0 0.0
  %154 = vmatprep.subr.mxu0 0.0
  %155 = vmatpush1.msra.mxu0 0.0
  %156 = vmatprep.subr.mxu0 0.0
  %157 = vmatpush1.msra.mxu0 0.0
  %158 = vmatprep.subr.mxu0 0.0
  %159 = vmatpush1.msra.mxu0 0.0
  %160 = vmatprep.subr.mxu0 0.0
  %161 = vmatpush1.msra.mxu0 0.0
  %162 = vmatprep.subr.mxu0 0.0
  %163 = vmatpush1.msra.mxu0 0.0
  %164 = vmatprep.subr.mxu0 0.0
  %165 = vmatpush1.msra.mxu0 0.0
  %166 = vmatprep.subr.mxu0 0.0
  %167 = vmatpush1.msra.mxu0 0.0
  %168 = vmatprep.subr.mxu0 0.0
  %169 = vmatpush1.msra.mxu0 0.0
  %170 = vmatprep.subr.mxu0 0.0
  %171 = vmatpush1.msra.mxu0 0.0
  %172 = vmatprep.subr.mxu0 0.0
  %173 = vmatpush1.msra.mxu0 0.0
  %174 = vmatprep.subr.mxu0 0.0
  %175 = vmatpush1.msra.mxu0 0.0
  %176 = vmatprep.subr.mxu0 0.0
  %177 = vmatpush1.msra.mxu0 0.0
  %178 = vmatprep.subr.mxu0 0.0
  %179 = vmatpush1.msra.mxu0 0.0
  %180 = vmatprep.subr.mxu0 0.0
  %181 = vmatpush1.msra.mxu0 0.0
  %182 = vmatprep.subr.mxu0 0.0
  %183 = vmatpush1.msra.mxu0 0.0
  %184 = vmatprep.subr.mxu0 0.0
  %185 = vmatpush1.msra.mxu0 0.0
  %186 = vmatprep.subr.mxu0 0.0
  %187 = vmatpush1.msra.mxu0 0.0
  %188 = vmatprep.subr.mxu0 0.0
  %189 = vmatpush1.msra.mxu0 0.0
  %190 = vmatprep.subr.mxu0 0.0
  %191 = vmatpush1.msra.mxu0 0.0
  %192 = vmatprep.subr.mxu0 0.0
  %193 = vmatpush1.msra.mxu0 0.0
  %194 = vmatprep.mubr.f32.mxu0 0.0
  %195 = vmatmul.mubr.f32.gmra.mrb[0].mxu0 %v128
  %v196 = vpop.f32.mrb[0].mxu0
  %v197 = vadd.f32 %v124, %v196
  %v198 = vpop.f32.mrb[0].mxu0
  %199 = vdwg.mxu0
  %vm200 = vcmp.ge.f32.partialorder %v197, 0.0
  %v201 = vmul.f32 %v197, 0.05
  %v202 = vsel %vm200, %v197, %v201
  %vm203 = vcmask 15360
  %204 = vst.msk [vmem:[%s6] sm:$0xff] %vm203, %v202
  // Predicated region
  $region26: #{link_layer_forward.1} parent=0 // pred_check
    _
  $region27: #{link_layer_forward.1} parent=0 // pred_check_branch
    %206 = sbr.rel (0) target = $region29
  $region28: #{link_layer_forward.1} parent=0 // pred_region
    _
  $region29: #{link_layer_forward.1} parent=0 // pred_fallthru
    _
  // Predicated region
  $region30: #{link_layer_forward.1} parent=0 // pred_check
    _
  $region31: #{link_layer_forward.1} parent=0 // pred_check_branch
    %208 = sbr.rel (0) target = $region33
  $region32: #{link_layer_forward.1} parent=0 // pred_region
    _
  $region33: #{link_layer_forward.1} parent=0 // pred_fallthru
    _

</llo_original>
